<compile_context>
chip_gen: v6e
topology: v6e:2x2x1
jax: 0.10.0
libtpu: 0.0.40
codegen_flags: <defaults>
</compile_context>

<pallas_src>
import jax
import jax.numpy as jnp
from jax import lax
from jax.experimental import pallas as pl
from jax.experimental.pallas import tpu as pltpu

TEMP = 0.1
EPS = 1e-12  # F.normalize default eps


def _infonce_kernel(seed_ref, anchor_ref, pos_ref, neg_ref, ce_ref):
    # Blocks: seed (TB, 1) f32, anchor/pos/neg (TB, N, D), ce (TB, 1) f32.
    a = anchor_ref[...].astype(jnp.float32)
    p = pos_ref[...].astype(jnp.float32)
    n = neg_ref[...].astype(jnp.float32)
    s = seed_ref[...]                                     # (TB, 1)

    # Row-wise reductions along D (lane axis) -> (TB, N). Only full-tensor pass.
    sa = jnp.sum(a * a, axis=-1)
    sp = jnp.sum(p * p, axis=-1)
    sn = jnp.sum(n * n, axis=-1)
    dap = jnp.sum(a * p, axis=-1)
    dan = jnp.sum(a * n, axis=-1)

    # neg_mixed = s*a + (1-s)*n; <a,neg_mixed> and ||neg_mixed||^2 as quadratic
    # forms of the raw dots (no (TB, N, D) mixing pass).
    t = 1.0 - s
    dan_m = s * sa + t * dan
    sn_m = s * s * sa + 2.0 * s * t * dan + t * t * sn

    # 1 / max(||x||, EPS) == rsqrt(max(||x||^2, EPS^2))
    eps2 = EPS * EPS
    inv_a = lax.rsqrt(jnp.maximum(sa, eps2))
    inv_p = lax.rsqrt(jnp.maximum(sp, eps2))
    inv_n = lax.rsqrt(jnp.maximum(sn_m, eps2))

    inv_temp = 1.0 / TEMP
    pos_score = dap * inv_a * inv_p * inv_temp            # (TB, N) == logits[:, :N]
    neg_score = dan_m * inv_a * inv_n * inv_temp          # (TB, N) == logits[:, N:]

    # Cross entropy with label 0 over implicit concat [pos_score, neg_score].
    m = jnp.maximum(jnp.max(pos_score, axis=-1, keepdims=True),
                    jnp.max(neg_score, axis=-1, keepdims=True))       # (TB, 1)
    lse = jnp.log(jnp.sum(jnp.exp(pos_score - m), axis=-1, keepdims=True)
                  + jnp.sum(jnp.exp(neg_score - m), axis=-1, keepdims=True)) + m
    ce_ref[...] = lse - pos_score[:, 0:1]                 # (TB, 1) per-sample CE


def _pick_block_b(B, N, D, itemsize):
    """Largest batch tile keeping 3 inputs x 2 pipeline buffers <= ~24 MiB."""
    budget = 24 * 1024 * 1024
    per_row = 3 * 2 * N * D * itemsize
    tb = budget // max(per_row, 1)
    if tb >= B:
        return B
    return max(8, (tb // 8) * 8)


def infonce_loss(anchor_emb, pos_emb, neg_emb, key, reduction="mean",
                 block_b=None):
    B, N, D = anchor_emb.shape
    itemsize = jnp.dtype(anchor_emb.dtype).itemsize

    if block_b is None:
        block_b = _pick_block_b(B, N, D, itemsize)
    if block_b >= B:
        block_b = B
        b_pad = B
    else:
        block_b = max(8, (block_b // 8) * 8)     # sublane-aligned batch tile
        b_pad = pl.cdiv(B, block_b) * block_b

    # torch.rand(B, 1, 1) / 2 -> per-batch mixing coefficient in [0, 0.5)
    seed = jax.random.uniform(key, (B, 1), dtype=jnp.float32) / 2.0

    def pad_b(x):
        if b_pad == B:
            return x
        return jnp.pad(x, ((0, b_pad - B),) + ((0, 0),) * (x.ndim - 1))

    grid = (b_pad // block_b,)

    out = pl.pallas_call(
        _infonce_kernel,
        out_shape=jax.ShapeDtypeStruct((b_pad, 1), jnp.float32),
        grid=grid,
        in_specs=[
            pl.BlockSpec((block_b, 1), lambda i: (i, 0)),        # seed
            pl.BlockSpec((block_b, N, D), lambda i: (i, 0, 0)),  # anchor
            pl.BlockSpec((block_b, N, D), lambda i: (i, 0, 0)),  # pos
            pl.BlockSpec((block_b, N, D), lambda i: (i, 0, 0)),  # neg
        ],
        out_specs=pl.BlockSpec((block_b, 1), lambda i: (i, 0)),
        compiler_params=pltpu.CompilerParams(
            dimension_semantics=("parallel",),          # megacore on v7x
            vmem_limit_bytes=40 * 1024 * 1024,          # above v5e/v6e defaults
        ),
        cost_estimate=pl.CostEstimate(
            flops=12 * b_pad * N * D,
            transcendentals=5 * b_pad * N,
            bytes_accessed=3 * b_pad * N * D * itemsize + b_pad * 8,
        ),
    )(pad_b(seed), pad_b(anchor_emb), pad_b(pos_emb), pad_b(neg_emb))

    per = out[:B, 0]
    if reduction == "mean":
        return jnp.mean(per)
    if reduction == "sum":
        return jnp.sum(per)
    return per


def _infonce_ref(anchor, pos, neg, key, reduction="mean"):
    """Pure-JAX reference mirroring the PyTorch forward (explicit normalize)."""
    B = anchor.shape[0]
    seed = jax.random.uniform(key, (B, 1), dtype=jnp.float32) / 2.0
    seed3 = seed[:, :, None]                               # (B, 1, 1)
    neg = seed3 * anchor + (1.0 - seed3) * neg

    def norm(x):
        n = jnp.sqrt(jnp.sum(x * x, axis=-1, keepdims=True))
        return x / jnp.maximum(n, EPS)

    a, p, n = norm(anchor), norm(pos), norm(neg)
    pos_score = jnp.sum(a * p, axis=-1)
    neg_score = jnp.sum(a * n, axis=-1)
    logits = jnp.concatenate([pos_score, neg_score], axis=-1) / TEMP
    per = jax.nn.logsumexp(logits, axis=-1) - logits[:, 0]
    if reduction == "mean":
        return jnp.mean(per)
    if reduction == "sum":
        return jnp.sum(per)
    return per


if __name__ == "__main__":
    key = jax.random.PRNGKey(0)
    k_a, k_p, k_n, k_seed, k_rest = jax.random.split(key, 5)

    # 1) Small shape: single block (block_b == B), grid=(1,)
    B, N, D = 2, 8, 32
    anchor = jax.random.normal(k_a, (B, N, D), dtype=jnp.float32)
    pos = jax.random.normal(k_p, (B, N, D), dtype=jnp.float32)
    neg = jax.random.normal(k_n, (B, N, D), dtype=jnp.float32)

    loss = jax.block_until_ready(infonce_loss(anchor, pos, neg, k_seed, "mean"))
    ref = _infonce_ref(anchor, pos, neg, k_seed, "mean")
    assert jnp.allclose(loss, ref, rtol=1e-5, atol=1e-5), (loss, ref)

    loss_n = jax.block_until_ready(infonce_loss(anchor, pos, neg, k_seed, "none"))
    ref_n = _infonce_ref(anchor, pos, neg, k_seed, "none")
    assert jnp.allclose(loss_n, ref_n, rtol=1e-5, atol=1e-5), (loss_n, ref_n)

    # 2) Multi-block + batch padding (B=20 -> 24, grid=3), lane-full D=128
    ka, kp, kn, ks = jax.random.split(k_rest, 4)
    B2, N2, D2 = 20, 8, 128
    a2 = jax.random.normal(ka, (B2, N2, D2), dtype=jnp.float32)
    p2 = jax.random.normal(kp, (B2, N2, D2), dtype=jnp.float32)
    n2 = jax.random.normal(kn, (B2, N2, D2), dtype=jnp.float32)

    loss2 = jax.block_until_ready(
        infonce_loss(a2, p2, n2, ks, "sum", block_b=8))
    ref2 = _infonce_ref(a2, p2, n2, ks, "sum")
    assert jnp.allclose(loss2, ref2, rtol=1e-5, atol=1e-4), (loss2, ref2)

    # 3) bf16 embeddings (halved HBM reads), f32 accumulation inside kernel
    loss3 = jax.block_until_ready(
        infonce_loss(a2.astype(jnp.bfloat16), p2.astype(jnp.bfloat16),
                     n2.astype(jnp.bfloat16), ks, "mean", block_b=8))
    ref3 = _infonce_ref(a2, p2, n2, ks, "mean")
    assert jnp.allclose(loss3, ref3, rtol=5e-2, atol=5e-2), (loss3, ref3)

    print("KERNEL_OK")
</pallas_src>

<mosaic_0001>
module attributes {stable_mosaic.version = 11 : i64} {
  func.func @_infonce_kernel(%arg0: i32, %arg1: memref<2x1xf32, #tpu.memory_space<vmem>>, %arg2: memref<2x8x32xf32, #tpu.memory_space<vmem>>, %arg3: memref<2x8x32xf32, #tpu.memory_space<vmem>>, %arg4: memref<2x8x32xf32, #tpu.memory_space<vmem>>, %arg5: memref<2x1xf32, #tpu.memory_space<vmem>>) attributes {dimension_semantics = [#tpu.dimension_semantics<parallel>], iteration_bounds = array<i64: 1>, scalar_prefetch = 0 : i64, scratch_operands = 0 : i64, tpu.core_type = #tpu.core_type<tc>, window_params = [{transform_indices = @transform_0, window_bounds = array<i64: 2, 1>}, {transform_indices = @transform_1, window_bounds = array<i64: 2, 8, 32>}, {transform_indices = @transform_2, window_bounds = array<i64: 2, 8, 32>}, {transform_indices = @transform_3, window_bounds = array<i64: 2, 8, 32>}, {transform_indices = @transform_4, window_bounds = array<i64: 2, 1>}]} {
    %c0 = arith.constant 0 : index
    %c0_0 = arith.constant 0 : index
    %c0_1 = arith.constant 0 : index
    %0 = vector.load %arg2[%c0, %c0_0, %c0_1] : memref<2x8x32xf32, #tpu.memory_space<vmem>>, vector<2x8x32xf32>
    %c0_2 = arith.constant 0 : index
    %c0_3 = arith.constant 0 : index
    %c0_4 = arith.constant 0 : index
    %1 = vector.load %arg3[%c0_2, %c0_3, %c0_4] : memref<2x8x32xf32, #tpu.memory_space<vmem>>, vector<2x8x32xf32>
    %c0_5 = arith.constant 0 : index
    %c0_6 = arith.constant 0 : index
    %c0_7 = arith.constant 0 : index
    %2 = vector.load %arg4[%c0_5, %c0_6, %c0_7] : memref<2x8x32xf32, #tpu.memory_space<vmem>>, vector<2x8x32xf32>
    %c0_8 = arith.constant 0 : index
    %c0_9 = arith.constant 0 : index
    %3 = vector.load %arg1[%c0_8, %c0_9] : memref<2x1xf32, #tpu.memory_space<vmem>>, vector<2x1xf32>
    %4 = arith.mulf %0, %0 : vector<2x8x32xf32>
    %cst = arith.constant dense<0.000000e+00> : vector<2x8xf32>
    %5 = vector.multi_reduction <add>, %4, %cst [2] : vector<2x8x32xf32> to vector<2x8xf32>
    %6 = arith.mulf %1, %1 : vector<2x8x32xf32>
    %cst_10 = arith.constant dense<0.000000e+00> : vector<2x8xf32>
    %7 = vector.multi_reduction <add>, %6, %cst_10 [2] : vector<2x8x32xf32> to vector<2x8xf32>
    %8 = arith.mulf %2, %2 : vector<2x8x32xf32>
    %cst_11 = arith.constant dense<0.000000e+00> : vector<2x8xf32>
    %9 = vector.multi_reduction <add>, %8, %cst_11 [2] : vector<2x8x32xf32> to vector<2x8xf32>
    %10 = arith.mulf %0, %1 : vector<2x8x32xf32>
    %cst_12 = arith.constant dense<0.000000e+00> : vector<2x8xf32>
    %11 = vector.multi_reduction <add>, %10, %cst_12 [2] : vector<2x8x32xf32> to vector<2x8xf32>
    %12 = arith.mulf %0, %2 : vector<2x8x32xf32>
    %cst_13 = arith.constant dense<0.000000e+00> : vector<2x8xf32>
    %13 = vector.multi_reduction <add>, %12, %cst_13 [2] : vector<2x8x32xf32> to vector<2x8xf32>
    %cst_14 = arith.constant 1.000000e+00 : f32
    %14 = vector.broadcast %cst_14 : f32 to vector<2x1xf32>
    %15 = arith.subf %14, %3 : vector<2x1xf32>
    %16 = vector.broadcast %3 : vector<2x1xf32> to vector<2x8xf32>
    %17 = arith.mulf %16, %5 : vector<2x8xf32>
    %18 = vector.broadcast %15 : vector<2x1xf32> to vector<2x8xf32>
    %19 = arith.mulf %18, %13 : vector<2x8xf32>
    %20 = arith.addf %17, %19 : vector<2x8xf32>
    %21 = arith.mulf %3, %3 : vector<2x1xf32>
    %22 = vector.broadcast %21 : vector<2x1xf32> to vector<2x8xf32>
    %23 = arith.mulf %22, %5 : vector<2x8xf32>
    %cst_15 = arith.constant 2.000000e+00 : f32
    %24 = vector.broadcast %cst_15 : f32 to vector<2x1xf32>
    %25 = arith.mulf %24, %3 : vector<2x1xf32>
    %26 = arith.mulf %25, %15 : vector<2x1xf32>
    %27 = vector.broadcast %26 : vector<2x1xf32> to vector<2x8xf32>
    %28 = arith.mulf %27, %13 : vector<2x8xf32>
    %29 = arith.addf %23, %28 : vector<2x8xf32>
    %30 = arith.mulf %15, %15 : vector<2x1xf32>
    %31 = vector.broadcast %30 : vector<2x1xf32> to vector<2x8xf32>
    %32 = arith.mulf %31, %9 : vector<2x8xf32>
    %33 = arith.addf %29, %32 : vector<2x8xf32>
    %cst_16 = arith.constant 1.000000e-24 : f32
    %34 = vector.broadcast %cst_16 : f32 to vector<2x8xf32>
    %35 = arith.maximumf %5, %34 : vector<2x8xf32>
    %36 = math.rsqrt %35 : vector<2x8xf32>
    %cst_17 = arith.constant 1.000000e-24 : f32
    %37 = vector.broadcast %cst_17 : f32 to vector<2x8xf32>
    %38 = arith.maximumf %7, %37 : vector<2x8xf32>
    %39 = math.rsqrt %38 : vector<2x8xf32>
    %cst_18 = arith.constant 1.000000e-24 : f32
    %40 = vector.broadcast %cst_18 : f32 to vector<2x8xf32>
    %41 = arith.maximumf %33, %40 : vector<2x8xf32>
    %42 = math.rsqrt %41 : vector<2x8xf32>
    %43 = arith.mulf %11, %36 : vector<2x8xf32>
    %44 = arith.mulf %43, %39 : vector<2x8xf32>
    %cst_19 = arith.constant 1.000000e+01 : f32
    %45 = vector.broadcast %cst_19 : f32 to vector<2x8xf32>
    %46 = arith.mulf %44, %45 : vector<2x8xf32>
    %47 = arith.mulf %20, %36 : vector<2x8xf32>
    %48 = arith.mulf %47, %42 : vector<2x8xf32>
    %cst_20 = arith.constant 1.000000e+01 : f32
    %49 = vector.broadcast %cst_20 : f32 to vector<2x8xf32>
    %50 = arith.mulf %48, %49 : vector<2x8xf32>
    %cst_21 = arith.constant dense<0xFF800000> : vector<2xf32>
    %51 = vector.multi_reduction <maximumf>, %46, %cst_21 [1] : vector<2x8xf32> to vector<2xf32>
    %52 = vector.shape_cast %51 : vector<2xf32> to vector<2x1xf32>
    %cst_22 = arith.constant dense<0xFF800000> : vector<2xf32>
    %53 = vector.multi_reduction <maximumf>, %50, %cst_22 [1] : vector<2x8xf32> to vector<2xf32>
    %54 = vector.shape_cast %53 : vector<2xf32> to vector<2x1xf32>
    %55 = arith.maximumf %52, %54 : vector<2x1xf32>
    %56 = vector.broadcast %55 : vector<2x1xf32> to vector<2x8xf32>
    %57 = arith.subf %46, %56 : vector<2x8xf32>
    %58 = math.exp %57 : vector<2x8xf32>
    %cst_23 = arith.constant dense<0.000000e+00> : vector<2xf32>
    %59 = vector.multi_reduction <add>, %58, %cst_23 [1] : vector<2x8xf32> to vector<2xf32>
    %60 = vector.shape_cast %59 : vector<2xf32> to vector<2x1xf32>
    %61 = vector.broadcast %55 : vector<2x1xf32> to vector<2x8xf32>
    %62 = arith.subf %50, %61 : vector<2x8xf32>
    %63 = math.exp %62 : vector<2x8xf32>
    %cst_24 = arith.constant dense<0.000000e+00> : vector<2xf32>
    %64 = vector.multi_reduction <add>, %63, %cst_24 [1] : vector<2x8xf32> to vector<2xf32>
    %65 = vector.shape_cast %64 : vector<2xf32> to vector<2x1xf32>
    %66 = arith.addf %60, %65 : vector<2x1xf32>
    %67 = math.log %66 : vector<2x1xf32>
    %68 = arith.addf %67, %55 : vector<2x1xf32>
    %69 = vector.extract_strided_slice %46 {offsets = [0, 0], sizes = [2, 1], strides = [1, 1]} : vector<2x8xf32> to vector<2x1xf32>
    %70 = arith.subf %68, %69 : vector<2x1xf32>
    %c0_25 = arith.constant 0 : index
    %c0_26 = arith.constant 0 : index
    %71 = vector.load %arg5[%c0_25, %c0_26] : memref<2x1xf32, #tpu.memory_space<vmem>>, vector<2x1xf32>
    tpu.vector_store %arg5[%c0_25, %c0_26], %70 {strides = array<i32>} : memref<2x1xf32, #tpu.memory_space<vmem>>, vector<2x1xf32>,
    return
  }
  func.func @transform_0(%arg0: i32) -> (i32, i32) {
    %c0_i32 = arith.constant 0 : i32
    %c0_i32_0 = arith.constant 0 : i32
    return %arg0, %c0_i32 : i32, i32
  }
  func.func @transform_1(%arg0: i32) -> (i32, i32, i32) {
    %c0_i32 = arith.constant 0 : i32
    %c0_i32_0 = arith.constant 0 : i32
    %c0_i32_1 = arith.constant 0 : i32
    return %arg0, %c0_i32, %c0_i32_0 : i32, i32, i32
  }
  func.func @transform_2(%arg0: i32) -> (i32, i32, i32) {
    %c0_i32 = arith.constant 0 : i32
    %c0_i32_0 = arith.constant 0 : i32
    %c0_i32_1 = arith.constant 0 : i32
    return %arg0, %c0_i32, %c0_i32_0 : i32, i32, i32
  }
  func.func @transform_3(%arg0: i32) -> (i32, i32, i32) {
    %c0_i32 = arith.constant 0 : i32
    %c0_i32_0 = arith.constant 0 : i32
    %c0_i32_1 = arith.constant 0 : i32
    return %arg0, %c0_i32, %c0_i32_0 : i32, i32, i32
  }
  func.func @transform_4(%arg0: i32) -> (i32, i32) {
    %c0_i32 = arith.constant 0 : i32
    %c0_i32_0 = arith.constant 0 : i32
    return %arg0, %c0_i32 : i32, i32
  }
}

</mosaic_0001>

<llo_original>
// kernel: tpu_custom_call.1
$region0: #{tpu_custom_call.1}
  #allocation0 [shape = 'u32[]', space=smem, size = 0x4, offset = 0x4, fixed_abs, tag = 'smem constant byte address 0x4 - core index']
  #allocation1 [shape = 'u32[144,128]{1,0:T(1,128)}', space=vmem, size = 0x12000, scoped, tag = 'internal scratch']
  %s0 = inlined_call_operand.vmem [shape: f32[2,1], index: 0, kind: input, shape index: {}]
  %s1 = inlined_call_operand.hbm [shape: f32[2,8,32], index: 1, kind: input, shape index: {}]
  %s2 = inlined_call_operand.hbm [shape: f32[2,8,32], index: 2, kind: input, shape index: {}]
  %s3 = inlined_call_operand.hbm [shape: f32[2,8,32], index: 3, kind: input, shape index: {}]
  %s4 = inlined_call_operand.vmem [shape: f32[2,1], index: 4, kind: output, shape index: {}]
  %s5 = sld [smem:[#allocation0]]
  $region38: #{tpu_custom_call.1} parent=0
    _
  %s7 = ssub.s32 1, %s5
  %s8 = scalar_select 0, %s7, %s5
  $region1: #{tpu_custom_call.1} parent=0
    #allocation2 [shape = 'u8[8192]{0}', space=vmem, size = 0x2000, scoped, tag = 'input window, operand 1, single buffered']
    #allocation3 [shape = 's32[1]{0}', space=sflag, size = 0x4, scoped, tag = 'scoped memory for tpu_custom_call.1']
    #allocation4 [shape = 'u8[8192]{0}', space=vmem, size = 0x2000, scoped, tag = 'input window, operand 2, single buffered']
    #allocation5 [shape = 's32[1]{0}', space=sflag, size = 0x4, scoped, tag = 'scoped memory for tpu_custom_call.1']
    #allocation6 [shape = 'u8[8192]{0}', space=vmem, size = 0x2000, scoped, tag = 'input window, operand 3, single buffered']
    %9 = vsyncpa [#allocation3], 0
    %10 = vsyncpa [#allocation5], 0
    // Predicated region
    $region2: #{tpu_custom_call.1} parent=1 // pred_check
      _
    $region3: #{tpu_custom_call.1} parent=1 // pred_check_branch
      %12 = sbr.rel (0) target = $region5
    $region4: #{tpu_custom_call.1} parent=1 // pred_region
      _
    $region5: #{tpu_custom_call.1} parent=1 // pred_fallthru
      _
    // Predicated region
    $region6: #{tpu_custom_call.1} parent=1 // pred_check
      _
    $region7: #{tpu_custom_call.1} parent=1 // pred_check_branch
      %14 = sbr.rel (0) target = $region9
    $region8: #{tpu_custom_call.1} parent=1 // pred_region
      %s16 = ssub.s32 256, 256
      %17 = vsyncadd [#allocation3], %s16
      %s18 = sshll.u32 [#allocation2], 4
      %s19 = int_to_ptr.vmem [resolvable:$true] %s18
      %24 = dma.hbm_to_vmem [thread:$0]  %s1, 256, %s19, [#allocation3], 128, 128, 8
    $region9: #{tpu_custom_call.1} parent=1 // pred_fallthru
      _
    // Predicated region
    $region10: #{tpu_custom_call.1} parent=1 // pred_check
      _
    $region11: #{tpu_custom_call.1} parent=1 // pred_check_branch
      %26 = sbr.rel (0) target = $region13
    $region12: #{tpu_custom_call.1} parent=1 // pred_region
      %s28 = ssub.s32 256, 256
      %29 = vsyncadd [#allocation5], %s28
      %s30 = sshll.u32 [#allocation4], 4
      %s31 = int_to_ptr.vmem [resolvable:$true] %s30
      %36 = dma.hbm_to_vmem [thread:$0]  %s2, 256, %s31, [#allocation5], 128, 128, 8
    $region13: #{tpu_custom_call.1} parent=1 // pred_fallthru
      _
    // Predicated region
    $region14: #{tpu_custom_call.1} parent=1 // pred_check
      _
    $region15: #{tpu_custom_call.1} parent=1 // pred_check_branch
      %38 = sbr.rel (0) target = $region17
    $region16: #{tpu_custom_call.1} parent=1 // pred_region
      %s40 = ssub.s32 256, 256
      %41 = vsyncadd [#allocation5], %s40
      %s42 = sshll.u32 [#allocation6], 4
      %s43 = int_to_ptr.vmem [resolvable:$true] %s42
      %48 = dma.hbm_to_vmem [thread:$0]  %s3, 256, %s43, [#allocation5], 128, 128, 8
    $region17: #{tpu_custom_call.1} parent=1 // pred_fallthru
      _
    // Predicated region
    $region18: #{tpu_custom_call.1} parent=1 // pred_check
      _
    $region19: #{tpu_custom_call.1} parent=1 // pred_check_branch
      %50 = sbr.rel (0) target = $region21
    $region20: #{tpu_custom_call.1} parent=1 // pred_region
      %51 = dma.done [#allocation3], 256
    $region21: #{tpu_custom_call.1} parent=1 // pred_fallthru
      _
    // Predicated region
    $region22: #{tpu_custom_call.1} parent=1 // pred_check
      _
    $region23: #{tpu_custom_call.1} parent=1 // pred_check_branch
      %53 = sbr.rel (0) target = $region25
    $region24: #{tpu_custom_call.1} parent=1 // pred_region
      %54 = dma.done [#allocation5], 256
    $region25: #{tpu_custom_call.1} parent=1 // pred_fallthru
      _
    // Predicated region
    $region26: #{tpu_custom_call.1} parent=1 // pred_check
      _
    $region27: #{tpu_custom_call.1} parent=1 // pred_check_branch
      %56 = sbr.rel (0) target = $region29
    $region28: #{tpu_custom_call.1} parent=1 // pred_region
      %57 = dma.done [#allocation5], 256
    $region29: #{tpu_custom_call.1} parent=1 // pred_fallthru
      _
    %v58 = vld [vmem:[#allocation2] sm:$0xff]
    %v59 = vld [vmem:[#allocation2 + $0x8] sm:$0xff]
    %v60 = vld [vmem:[#allocation4] sm:$0xff]
    %v61 = vld [vmem:[#allocation4 + $0x8] sm:$0xff]
    %v62 = vld [vmem:[#allocation6] sm:$0xff]
    %v63 = vld [vmem:[#allocation6 + $0x8] sm:$0xff]
    %v64 = vld [vmem:[%s0] sm:$0x3]
    %v65 = vmul.f32 %v58, %v58
    %v66 = vmul.f32 %v59, %v59
    %vm67 = vcmask 261120
    %v68 = vsel %vm67, %v65, 0.0
    %69 = vadd.xlane.f32.xlu0 %v68
    %v70 = vpop.xlane.xlu0 %69
    %v71 = vsel %vm67, %v66, 0.0
    %72 = vadd.xlane.f32.xlu0 %v71
    %v73 = vpop.xlane.xlu0 %72
    %v74 = vmul.f32 %v60, %v60
    %v75 = vmul.f32 %v61, %v61
    %v76 = vsel %vm67, %v74, 0.0
    %77 = vadd.xlane.f32.xlu0 %v76
    %v78 = vpop.xlane.xlu0 %77
    %v79 = vsel %vm67, %v75, 0.0
    %80 = vadd.xlane.f32.xlu0 %v79
    %v81 = vpop.xlane.xlu0 %80
    %v82 = vmul.f32 %v62, %v62
    %v83 = vmul.f32 %v63, %v63
    %v84 = vsel %vm67, %v82, 0.0
    %85 = vadd.xlane.f32.xlu0 %v84
    %v86 = vpop.xlane.xlu0 %85
    %v87 = vsel %vm67, %v83, 0.0
    %88 = vadd.xlane.f32.xlu0 %v87
    %v89 = vpop.xlane.xlu0 %88
    %v90 = vmul.f32 %v58, %v60
    %v91 = vmul.f32 %v59, %v61
    %v92 = vsel %vm67, %v90, 0.0
    %93 = vadd.xlane.f32.xlu0 %v92
    %v94 = vpop.xlane.xlu0 %93
    %v95 = vsel %vm67, %v91, 0.0
    %96 = vadd.xlane.f32.xlu0 %v95
    %v97 = vpop.xlane.xlu0 %96
    %v98 = vmul.f32 %v58, %v62
    %v99 = vmul.f32 %v59, %v63
    %v100 = vsel %vm67, %v98, 0.0
    %101 = vadd.xlane.f32.xlu0 %v100
    %v102 = vpop.xlane.xlu0 %101
    %v103 = vsel %vm67, %v99, 0.0
    %104 = vadd.xlane.f32.xlu0 %v103
    %v105 = vpop.xlane.xlu0 %104
    %v106 = vsub.f32 1.0, %v64
    %108 = vset.pattern.permute.xlu0 0
    %109 = vperm.xlu0 %108, %v64
    %v110 = vpop.permute.xlu0 %109
    %v114 = vlaneseq
    %v115 = vand.u32 %v114, 127
    %v116 = vlaneseq
    %v117 = vshrl.u32 %v116, 7
    %v118 = vsub.s32 %v115, %v117
    %v119 = vrot.slane %v70, %v118
    %v120 = vlaneseq
    %v121 = vshrl.u32 %v120, 7
    %v122 = vsub.s32 %v115, %v121
    %v123 = vrot.slane %v73, %v122
    %vm124 = vcmask 1041409
    %v125 = vsel %vm124, %v123, %v119
    %v127 = vmul.f32 %v110, %v125
    %129 = vset.pattern.permute.xlu0 0
    %130 = vperm.xlu0 %129, %v106
    %v131 = vpop.permute.xlu0 %130
    %v135 = vlaneseq
    %v136 = vshrl.u32 %v135, 7
    %v137 = vsub.s32 %v115, %v136
    %v138 = vrot.slane %v102, %v137
    %v139 = vlaneseq
    %v140 = vshrl.u32 %v139, 7
    %v141 = vsub.s32 %v115, %v140
    %v142 = vrot.slane %v105, %v141
    %v143 = vsel %vm124, %v142, %v138
    %v145 = vmul.f32 %v131, %v143
    %v146 = vadd.f32 %v127, %v145
    %v147 = vmul.f32 %v64, %v64
    %149 = vset.pattern.permute.xlu0 0
    %150 = vperm.xlu0 %149, %v147
    %v151 = vpop.permute.xlu0 %150
    %v153 = vmul.f32 %v151, %v125
    %v154 = vmul.f32 %v64, 2.0
    %v155 = vmul.f32 %v154, %v106
    %157 = vset.pattern.permute.xlu0 0
    %158 = vperm.xlu0 %157, %v155
    %v159 = vpop.permute.xlu0 %158
    %v161 = vmul.f32 %v159, %v143
    %v162 = vadd.f32 %v153, %v161
    %v163 = vmul.f32 %v106, %v106
    %165 = vset.pattern.permute.xlu0 0
    %166 = vperm.xlu0 %165, %v163
    %v167 = vpop.permute.xlu0 %166
    %v171 = vlaneseq
    %v172 = vshrl.u32 %v171, 7
    %v173 = vsub.s32 %v115, %v172
    %v174 = vrot.slane %v86, %v173
    %v175 = vlaneseq
    %v176 = vshrl.u32 %v175, 7
    %v177 = vsub.s32 %v115, %v176
    %v178 = vrot.slane %v89, %v177
    %v179 = vsel %vm124, %v178, %v174
    %v181 = vmul.f32 %v167, %v179
    %v182 = vadd.f32 %v162, %v181
    %v183 = vmax.f32 %v70, 1e-24
    %v184 = vmax.f32 %v73, 1e-24
    %v185 = vrsqrt.pop %v183
    %v186 = vrsqrt.pop %v184
    %v187 = vmax.f32 %v78, 1e-24
    %v188 = vmax.f32 %v81, 1e-24
    %v189 = vrsqrt.pop %v187
    %v190 = vrsqrt.pop %v188
    %v191 = vmax.f32 %v182, 1e-24
    %v192 = vrsqrt.pop %v191
    %v193 = vmul.f32 %v94, %v185
    %v194 = vmul.f32 %v97, %v186
    %v195 = vmul.f32 %v193, %v189
    %v196 = vmul.f32 %v194, %v190
    %v197 = vmul.f32 %v195, 10.0
    %v198 = vmul.f32 %v196, 10.0
    %v201 = vlaneseq
    %v202 = vshrl.u32 %v201, 7
    %v203 = vsub.s32 %v115, %v202
    %v204 = vrot.slane %v185, %v203
    %v205 = vlaneseq
    %v206 = vshrl.u32 %v205, 7
    %v207 = vsub.s32 %v115, %v206
    %v208 = vrot.slane %v186, %v207
    %v209 = vsel %vm124, %v208, %v204
    %v211 = vmul.f32 %v146, %v209
    %v212 = vmul.f32 %v211, %v192
    %v213 = vmul.f32 %v212, 10.0
    %v216 = vlaneseq
    %v217 = vshrl.u32 %v216, 7
    %v218 = vsub.s32 %v115, %v217
    %v219 = vrot.slane %v197, %v218
    %v220 = vlaneseq
    %v221 = vshrl.u32 %v220, 7
    %v222 = vsub.s32 %v115, %v221
    %v223 = vrot.slane %v198, %v222
    %v224 = vsel %vm124, %v223, %v219
    %vm226 = vcmask 58368
    %v227 = vsel %vm226, %v224, -inf
    %228 = vmax.xlane.f32.xlu0 %v227
    %v229 = vpop.xlane.xlu0 %228
    %v230 = vsel %vm226, %v213, -inf
    %231 = vmax.xlane.f32.xlu0 %v230
    %v232 = vpop.xlane.xlu0 %231
    %v233 = vmax.f32 %v229, %v232
    %v235 = vlaneseq
    %v236 = vshrl.u32 %v235, 7
    %v237 = vsub.s32 0, %v236
    %v238 = vrot.slane %v233, %v237
    %v239 = vlaneseq
    %v240 = vshrl.u32 %v239, 7
    %v241 = vsub.s32 1, %v240
    %v242 = vrot.slane %v233, %v241
    %v245 = vsub.f32 %v197, %v238
    %v246 = vsub.f32 %v198, %v242
    %v247 = vmul.f32 %v245, 1.442695
    %v248 = vpow.pop %v247
    %v249 = vmul.f32 %v246, 1.442695
    %v250 = vpow.pop %v249
    %253 = vset.pattern.permute.xlu0 0
    %254 = vperm.xlu0 %253, %v248
    %v255 = vpop.permute.xlu0 %254
    %256 = vset.pattern.permute.xlu0 0
    %257 = vperm.xlu0 %256, %v250
    %v258 = vpop.permute.xlu0 %257
    %v259 = vlaneseq
    %v260 = vshrl.u32 %v259, 7
    %v261 = vsub.s32 %v115, %v260
    %v262 = vrot.slane %v255, %v261
    %v263 = vlaneseq
    %v264 = vshrl.u32 %v263, 7
    %v265 = vsub.s32 %v115, %v264
    %v266 = vrot.slane %v258, %v265
    %v267 = vsel %vm124, %v266, %v262
    %v269 = vsel %vm226, %v267, 0.0
    %270 = vadd.xlane.f32.xlu0 %v269
    %v271 = vpop.xlane.xlu0 %270
    %v272 = vsub.f32 %v213, %v233
    %v273 = vmul.f32 %v272, 1.442695
    %v274 = vpow.pop %v273
    %v275 = vsel %vm226, %v274, 0.0
    %276 = vadd.xlane.f32.xlu0 %v275
    %v277 = vpop.xlane.xlu0 %276
    %v278 = vadd.f32 %v271, %v277
    %v279 = vlog2.pop %v278
    %v280 = vmul.f32 %v279, 0.6931472
    %v281 = vadd.f32 %v280, %v233
    %v282 = vrot.slane %v198, 7
    %v283 = vsel %vm124, %v282, %v197
    %v285 = vsub.f32 %v281, %v283
    %vm286 = vcmask 1024
    %287 = vst.msk [vmem:[%s4] sm:$0x3] %vm286, %v285
    // Predicated region
    $region30: #{tpu_custom_call.1} parent=1 // pred_check
      _
    $region31: #{tpu_custom_call.1} parent=1 // pred_check_branch
      %289 = sbr.rel (0) target = $region33
    $region32: #{tpu_custom_call.1} parent=1 // pred_region
      _
    $region33: #{tpu_custom_call.1} parent=1 // pred_fallthru
      _
    // Predicated region
    $region34: #{tpu_custom_call.1} parent=1 // pred_check
      _
    $region35: #{tpu_custom_call.1} parent=1 // pred_check_branch
      %291 = sbr.rel (0) target = $region37
    $region36: #{tpu_custom_call.1} parent=1 // pred_region
      _
    $region37: #{tpu_custom_call.1} parent=1 // pred_fallthru
      _
    %292 = vsyncpa [#allocation3], 1
    %293 = vsyncpa [#allocation5], 1

</llo_original>
